<compile_context>
chip_gen: v7x
topology: tpu7x:2x2x1
jax: 0.10.0
libtpu: 0.0.40
codegen_flags: <defaults>
</compile_context>

<pallas_src>
import functools
import math

import jax
import jax.numpy as jnp
from jax.experimental import pallas as pl
from jax.experimental.pallas import tpu as pltpu


def _rel_bias_kernel(emb_t_ref, out_ref, *, tq, key_length, num_buckets,
                     max_distance):
    """One grid step: bias for `tq` query positions x all keys, lane-flattened."""
    K = key_length
    n = tq * K
    q0 = pl.program_id(0) * tq

    if K & (K - 1) == 0:
        # K is a power of two: build the flattened (q, k) indices directly in the
        # lane-dense (1, tq*K) layout (no relayout copy): p = q_local*K + k.
        shift = K.bit_length() - 1
        p = jax.lax.broadcasted_iota(jnp.int32, (1, n), 1)
        q_local = p >> shift
        k = p & (K - 1)
        rel = k - (q0 + q_local)                              # (1, n) int32
    else:
        # General K: natural 2-D iotas, then one small int32 relayout (n elems).
        ctx = q0 + jax.lax.broadcasted_iota(jnp.int32, (tq, K), 0)
        mem = jax.lax.broadcasted_iota(jnp.int32, (tq, K), 1)
        rel = (mem - ctx).reshape(1, n)

    # bidirectional=False branch: relative_position = -min(rel, 0)
    rel_pos = -jnp.minimum(rel, 0)

    max_exact = num_buckets // 2
    is_small = rel_pos < max_exact

    # "large" bucket formula; clamp the log argument so masked lanes stay finite.
    # (For lanes where is_small is True the clamped value is discarded by the
    # jnp.where below, so this matches torch exactly.)
    rp_f = jnp.maximum(rel_pos.astype(jnp.float32), float(max_exact))
    large_f = (jnp.log(rp_f / float(max_exact))
               / math.log(max_distance / max_exact)
               * (num_buckets - max_exact))
    # torch .to(torch.long) truncates toward zero; values are >= 0 here so
    # astype(int32) matches exactly.
    large = max_exact + large_f.astype(jnp.int32)
    large = jnp.minimum(large, num_buckets - 1)

    buckets = jnp.where(is_small, rel_pos, large)             # (1, n) int32

    # One-hot in the bucket-on-sublane / (q,k)-on-lane orientation (never
    # lane-padded, shared across all heads).
    bucket_iota = jax.lax.broadcasted_iota(jnp.int32, (num_buckets, n), 0)
    one_hot = (buckets == bucket_iota).astype(jnp.float32)    # (num_buckets, n)

    # (H, num_buckets) @ (num_buckets, n) -> (H, n) on the MXU; output block is
    # lane-dense so the store + HBM DMA are unmasked/full-width.
    out_ref[...] = jnp.dot(emb_t_ref[...], one_hot,
                           preferred_element_type=jnp.float32)


def _choose_tq(Q, K, num_buckets, num_heads, vmem_budget_bytes=16 << 20):
    """Pick a query-tile size.

    Constraints / preferences:
      * VMEM: one-hot (num_buckets, tq*K) f32 + double-buffered output block
        (num_heads, tq*K) f32 + small i32/f32 temps must fit the budget
        (conservative so it also fits v7x's smaller VMEM).
      * Lane alignment: tq*K % 128 == 0 (dense vst) — or fall back to tq == Q
        (full-extent block, always legal).
      * Prefer >= 2 grid steps so the "parallel" axis can shard across two
        TensorCores and writeback of step i overlaps compute of step i+1.
      * Within those constraints, take the LARGEST tile (per-step overhead
        ~0.35 us; bigger blocks amortize it and keep the DMA engine busy).
    """
    per_q = K * 4 * (num_buckets + 2 * num_heads + 8)
    cap = max(1, vmem_budget_bytes // per_q)
    target = min(Q, cap)
    if target >= Q and Q > 1:
        target = max(1, Q // 2)          # allow >= 2 grid steps when possible
    best = None
    for tq in range(min(target, Q), 0, -1):
        if Q % tq:
            continue
        if (tq * K) % 128 == 0:
            best = tq
            break
    # Fallback: single full-extent block (always a legal BlockSpec); stores may
    # be lane-masked but that padding is inherent to the final (…, K) layout.
    return best if best is not None else Q


@functools.partial(jax.jit, static_argnums=(1, 2),
                   static_argnames=("max_distance", "tq"))
def relative_attention_bias(emb_weight, query_length, key_length, *,
                            max_distance=128, tq=None):
    """emb_weight: (num_buckets, num_heads) f32.  Returns (1, H, Q, K) f32."""
    num_buckets, num_heads = emb_weight.shape
    Q, K = int(query_length), int(key_length)

    if tq is None:
        tq = _choose_tq(Q, K, num_buckets, num_heads)
    assert Q % tq == 0, "tq must divide query_length"
    assert (tq * K) % 128 == 0 or tq == Q, (
        "flipped output block (num_heads, tq*K) needs tq*K % 128 == 0 or tq == Q")

    # Pre-transpose the tiny (num_buckets, H) table once (fused under jit) so
    # the kernel's matmul directly produces heads-on-sublanes / (q,k)-on-lanes.
    emb_t = emb_weight.T                                      # (H, num_buckets)

    kernel = functools.partial(
        _rel_bias_kernel,
        tq=tq, key_length=K, num_buckets=num_buckets, max_distance=max_distance,
    )

    out_flat = pl.pallas_call(
        kernel,
        out_shape=jax.ShapeDtypeStruct((num_heads, Q * K), jnp.float32),
        grid_spec=pltpu.PrefetchScalarGridSpec(
            num_scalar_prefetch=0,
            grid=(Q // tq,),
            in_specs=[
                # transposed embedding table: same full block every grid step
                # (constant index_map -> no re-fetch between steps).
                pl.BlockSpec((num_heads, num_buckets), lambda i: (0, 0)),
            ],
            out_specs=pl.BlockSpec((num_heads, tq * K), lambda i: (0, i)),
        ),
        compiler_params=pltpu.CompilerParams(
            dimension_semantics=("parallel",),
            vmem_limit_bytes=32 * 1024 * 1024),
    )(emb_t)

    # Kernel output is already (H, q-major); reshape + add batch dim to match
    # torch's values.permute([2, 0, 1]).unsqueeze(0).
    return out_flat.reshape(num_heads, Q, K)[None]


def _reference(emb_weight, Q, K, max_distance=128):
    """Pure-JAX reference mirroring the PyTorch module (bidirectional=False)."""
    num_buckets = emb_weight.shape[0]
    ctx = jnp.arange(Q, dtype=jnp.int32)[:, None]
    mem = jnp.arange(K, dtype=jnp.int32)[None, :]
    rel = mem - ctx
    rel_pos = -jnp.minimum(rel, 0)
    max_exact = num_buckets // 2
    is_small = rel_pos < max_exact
    rp_f = jnp.maximum(rel_pos.astype(jnp.float32), float(max_exact))
    large = max_exact + (jnp.log(rp_f / max_exact)
                         / math.log(max_distance / max_exact)
                         * (num_buckets - max_exact)).astype(jnp.int32)
    large = jnp.minimum(large, num_buckets - 1)
    buckets = jnp.where(is_small, rel_pos, large)
    values = emb_weight[buckets]                         # (Q, K, H)
    return jnp.transpose(values, (2, 0, 1))[None]        # (1, H, Q, K)


if __name__ == "__main__":
    num_heads = 8
    num_buckets = 32
    max_distance = 128

    key = jax.random.PRNGKey(0)
    emb_weight = jax.random.normal(key, (num_buckets, num_heads),
                                   dtype=jnp.float32)

    # (Q, K) cases: tiny power-of-two K (fast index path, single grid step),
    # non-power-of-two K (general path, full-extent block), and a larger shape
    # exercising the log-bucket branch and the multi-step "parallel" grid.
    cases = [(8, 16), (8, 24), (128, 256)]
    for (query_length, key_length) in cases:
        out = relative_attention_bias(emb_weight, query_length, key_length,
                                      max_distance=max_distance)
        out = jax.block_until_ready(out)
        ref = _reference(emb_weight, query_length, key_length, max_distance)
        assert out.shape == (1, num_heads, query_length, key_length), out.shape
        assert jnp.allclose(out, ref, atol=1e-6), (
            (query_length, key_length), float(jnp.max(jnp.abs(out - ref))))

    print("KERNEL_OK")
</pallas_src>

<mosaic_0001>
module attributes {stable_mosaic.version = 11 : i64} {
  func.func @_rel_bias_kernel(%arg0: i32, %arg1: memref<8x32xf32, #tpu.memory_space<vmem>>, %arg2: memref<8x128xf32, #tpu.memory_space<vmem>>) attributes {dimension_semantics = [#tpu.dimension_semantics<parallel>], iteration_bounds = array<i64: 1>, scalar_prefetch = 0 : i64, scratch_operands = 0 : i64, tpu.core_type = #tpu.core_type<tc>, window_params = [{pipeline_mode = #tpu.pipeline_mode<synchronous>, transform_indices = @transform_0, window_bounds = array<i64: 8, 32>}, {transform_indices = @transform_1, window_bounds = array<i64: 8, 128>}]} {
    %c8_i32 = arith.constant 8 : i32
    %0 = arith.muli %arg0, %c8_i32 : i32
    %1 = tpu.iota {dimensions = array<i32: 1>} : vector<1x128xi32>
    %c4_i32 = arith.constant 4 : i32
    %2 = vector.broadcast %c4_i32 : i32 to vector<1x128xi32>
    %3 = arith.shrsi %1, %2 : vector<1x128xi32>
    %c15_i32 = arith.constant 15 : i32
    %4 = vector.broadcast %c15_i32 : i32 to vector<1x128xi32>
    %5 = arith.andi %1, %4 : vector<1x128xi32>
    %6 = vector.broadcast %0 : i32 to vector<1x128xi32>
    %7 = arith.addi %6, %3 : vector<1x128xi32>
    %8 = arith.subi %5, %7 : vector<1x128xi32>
    %c0_i32 = arith.constant 0 : i32
    %9 = vector.broadcast %c0_i32 : i32 to vector<1x128xi32>
    %10 = arith.minsi %8, %9 : vector<1x128xi32>
    %c0_i32_0 = arith.constant 0 : i32
    %11 = vector.broadcast %c0_i32_0 : i32 to vector<1x128xi32>
    %12 = arith.subi %11, %10 : vector<1x128xi32>
    %c16_i32 = arith.constant 16 : i32
    %13 = vector.broadcast %c16_i32 : i32 to vector<1x128xi32>
    %14 = arith.cmpi slt, %12, %13 : vector<1x128xi32>
    %15 = arith.sitofp %12 : vector<1x128xi32> to vector<1x128xf32>
    %cst = arith.constant 1.600000e+01 : f32
    %16 = vector.broadcast %cst : f32 to vector<1x128xf32>
    %17 = arith.maximumf %15, %16 : vector<1x128xf32>
    %cst_1 = arith.constant 1.600000e+01 : f32
    %18 = vector.broadcast %cst_1 : f32 to vector<1x128xf32>
    %19 = arith.divf %17, %18 : vector<1x128xf32>
    %20 = math.log %19 : vector<1x128xf32>
    %cst_2 = arith.constant 2.07944155 : f32
    %21 = vector.broadcast %cst_2 : f32 to vector<1x128xf32>
    %22 = arith.divf %20, %21 : vector<1x128xf32>
    %cst_3 = arith.constant 1.600000e+01 : f32
    %23 = vector.broadcast %cst_3 : f32 to vector<1x128xf32>
    %24 = arith.mulf %22, %23 : vector<1x128xf32>
    %25 = arith.fptosi %24 : vector<1x128xf32> to vector<1x128xi32>
    %c16_i32_4 = arith.constant 16 : i32
    %26 = vector.broadcast %c16_i32_4 : i32 to vector<1x128xi32>
    %27 = arith.addi %26, %25 : vector<1x128xi32>
    %c31_i32 = arith.constant 31 : i32
    %28 = vector.broadcast %c31_i32 : i32 to vector<1x128xi32>
    %29 = arith.minsi %27, %28 : vector<1x128xi32>
    %30 = arith.select %14, %12, %29 : vector<1x128xi1>, vector<1x128xi32>
    %31 = tpu.iota {dimensions = array<i32: 0>} : vector<32x128xi32>
    %32 = vector.broadcast %30 : vector<1x128xi32> to vector<32x128xi32>
    %33 = arith.cmpi eq, %32, %31 : vector<32x128xi32>
    %34 = arith.extui %33 : vector<32x128xi1> to vector<32x128xi32>
    %35 = arith.sitofp %34 : vector<32x128xi32> to vector<32x128xf32>
    %c0 = arith.constant 0 : index
    %c0_5 = arith.constant 0 : index
    %36 = vector.load %arg1[%c0, %c0_5] : memref<8x32xf32, #tpu.memory_space<vmem>>, vector<8x32xf32>
    %cst_6 = arith.constant dense<0.000000e+00> : vector<8x128xf32>
    %37 = tpu.matmul %36, %35, %cst_6 {dimension_numbers = #tpu.dot_dimension_numbers<[1], [0], [0], [1], [0, 0, 1, 1], [], []>} : vector<8x32xf32>, vector<32x128xf32>, vector<8x128xf32> -> vector<8x128xf32>
    %c0_7 = arith.constant 0 : index
    %c0_8 = arith.constant 0 : index
    %38 = vector.load %arg2[%c0_7, %c0_8] : memref<8x128xf32, #tpu.memory_space<vmem>>, vector<8x128xf32>
    tpu.vector_store %arg2[%c0_7, %c0_8], %37 {strides = array<i32>} : memref<8x128xf32, #tpu.memory_space<vmem>>, vector<8x128xf32>,
    return
  }
  func.func @transform_0(%arg0: i32) -> (i32, i32) {
    %c0_i32 = arith.constant 0 : i32
    %c0_i32_0 = arith.constant 0 : i32
    %c0_i32_1 = arith.constant 0 : i32
    return %c0_i32, %c0_i32_0 : i32, i32
  }
  func.func @transform_1(%arg0: i32) -> (i32, i32) {
    %c0_i32 = arith.constant 0 : i32
    %c0_i32_0 = arith.constant 0 : i32
    return %c0_i32, %arg0 : i32, i32
  }
}

</mosaic_0001>

<llo_original>
// kernel: relative_attention_bias.1
$region0: #{relative_attention_bias.1}
  #allocation0 [shape = 'u32[]', space=smem, size = 0x4, offset = 0x4, fixed_abs, tag = 'smem constant byte address 0x4 - core index']
  #allocation1 [shape = 'u32[144,128]{1,0:T(1,128)}', space=vmem, size = 0x12000, scoped, tag = 'internal scratch']
  %s0 = inlined_call_operand.hbm [shape: f32[8,32], index: 0, kind: input, shape index: {}]
  %s1 = inlined_call_operand.vmem [shape: f32[8,128], index: 1, kind: output, shape index: {}]
  %s2 = sld [smem:[#allocation0]]
  $region18: #{relative_attention_bias.1} parent=0
    _
  %s4 = ssub.s32 1, %s2
  %s5 = scalar_select 0, %s4, %s2
  $region1: #{relative_attention_bias.1} parent=0
    #allocation2 [shape = 'u8[4096]{0}', space=vmem, size = 0x1000, scoped, tag = 'input window, operand 0, single buffered']
    #allocation3 [shape = 's32[1]{0}', space=sflag, size = 0x4, scoped, tag = 'scoped memory for relative_attention_bias.1']
    %6 = vsyncpa [#allocation3], 0
    // Predicated region
    $region2: #{relative_attention_bias.1} parent=1 // pred_check
      _
    $region3: #{relative_attention_bias.1} parent=1 // pred_check_branch
      %8 = sbr.rel (0) target = $region5
    $region4: #{relative_attention_bias.1} parent=1 // pred_region
      %s10 = ssub.s32 128, 128
      %11 = vsyncadd [#allocation3], %s10
      %s13 = sshll.u32 [#allocation2], 4
      %s14 = int_to_ptr.vmem [resolvable:$true] %s13
      %16 = dma.hbm_to_vmem [thread:$0]  %s0, 128, %s14, [#allocation3]
    $region5: #{relative_attention_bias.1} parent=1 // pred_fallthru
      _
    // Predicated region
    $region6: #{relative_attention_bias.1} parent=1 // pred_check
      _
    $region7: #{relative_attention_bias.1} parent=1 // pred_check_branch
      %18 = sbr.rel (0) target = $region9
    $region8: #{relative_attention_bias.1} parent=1 // pred_region
      %19 = dma.done [#allocation3], 128
    $region9: #{relative_attention_bias.1} parent=1 // pred_fallthru
      _
    %s20 = smul.u32 0, 8
    %v21 = vlaneseq
    %v22 = vand.u32 %v21, 127
    %v23 = vshra.s32 %v22, 4
    %v24 = vand.u32 %v22, 15
    %v25 = vstv %s20
    %v26 = vadd.s32 %v25, %v23
    %v27 = vsub.s32 %v24, %v26
    %vm28 = vcmp.lt.s32.totalorder %v27, 0
    %v29 = vsel %vm28, %v27, 0
    %v30 = vsub.s32 0, %v29
    %vm31 = vcmp.lt.s32.totalorder %v30, 16
    %v32 = vcvt.s32.f32 %v30
    %v33 = vmax.f32 %v32, 16.0
    %v34 = vrcp.pop 16.0
    %v35 = vmul.f32 %v33, %v34
    %v36 = vlog2.pop %v35
    %v37 = vmul.f32 %v36, 0.6931472
    %v38 = vrcp.pop 2.0794415
    %v39 = vmul.f32 %v37, %v38
    %v40 = vmul.f32 %v39, 16.0
    %v41 = vcvt.f32.s32.to.zero.pseudo %v40
    %v42 = vadd.s32 %v41, 16
    %vm43 = vcmp.lt.s32.totalorder %v42, 31
    %v44 = vsel %vm43, %v42, 31
    %v45 = vsel %vm31, %v30, %v44
    %v46 = vlaneseq
    %v47 = vshrl.u32 %v46, 7
    %v48 = vadd.s32 %v47, 8
    %v49 = vadd.s32 %v47, 16
    %v50 = vadd.s32 %v47, 24
    %vm51 = vcmp.eq.s32.totalorder %v45, %v47
    %vm52 = vcmp.eq.s32.totalorder %v45, %v48
    %vm53 = vcmp.eq.s32.totalorder %v45, %v49
    %vm54 = vcmp.eq.s32.totalorder %v45, %v50
    %v55 = vsel %vm51, 1, 0
    %v56 = vsel %vm52, 1, 0
    %v57 = vsel %vm53, 1, 0
    %v58 = vsel %vm54, 1, 0
    %v59 = vcvt.s32.f32 %v55
    %v60 = vcvt.s32.f32 %v56
    %v61 = vcvt.s32.f32 %v57
    %v62 = vcvt.s32.f32 %v58
    %v63 = vld [vmem:[#allocation2] sm:$0xff]
    %vm64 = vcmask 261120
    %v66 = vsel %vm64, %v63, 0
    %68 = vmatprep.subr.mxu0 0.0
    %69 = vmatpush1.msra.mxu0 %v59
    %70 = vmatprep.subr.mxu0 0.0
    %71 = vmatpush1.msra.mxu0 %v60
    %72 = vmatprep.subr.mxu0 0.0
    %73 = vmatpush1.msra.mxu0 %v61
    %74 = vmatprep.subr.mxu0 0.0
    %75 = vmatpush1.msra.mxu0 %v62
    %76 = vmatprep.subr.mxu0 0.0
    %77 = vmatpush1.msra.mxu0 0.0
    %78 = vmatprep.subr.mxu0 0.0
    %79 = vmatpush1.msra.mxu0 0.0
    %80 = vmatprep.subr.mxu0 0.0
    %81 = vmatpush1.msra.mxu0 0.0
    %82 = vmatprep.subr.mxu0 0.0
    %83 = vmatpush1.msra.mxu0 0.0
    %84 = vmatprep.subr.mxu0 0.0
    %85 = vmatpush1.msra.mxu0 0.0
    %86 = vmatprep.subr.mxu0 0.0
    %87 = vmatpush1.msra.mxu0 0.0
    %88 = vmatprep.subr.mxu0 0.0
    %89 = vmatpush1.msra.mxu0 0.0
    %90 = vmatprep.subr.mxu0 0.0
    %91 = vmatpush1.msra.mxu0 0.0
    %92 = vmatprep.subr.mxu0 0.0
    %93 = vmatpush1.msra.mxu0 0.0
    %94 = vmatprep.subr.mxu0 0.0
    %95 = vmatpush1.msra.mxu0 0.0
    %96 = vmatprep.subr.mxu0 0.0
    %97 = vmatpush1.msra.mxu0 0.0
    %98 = vmatprep.subr.mxu0 0.0
    %99 = vmatpush1.msra.mxu0 0.0
    %100 = vmatprep.subr.mxu0 0.0
    %101 = vmatpush1.msra.mxu0 0.0
    %102 = vmatprep.subr.mxu0 0.0
    %103 = vmatpush1.msra.mxu0 0.0
    %104 = vmatprep.subr.mxu0 0.0
    %105 = vmatpush1.msra.mxu0 0.0
    %106 = vmatprep.subr.mxu0 0.0
    %107 = vmatpush1.msra.mxu0 0.0
    %108 = vmatprep.subr.mxu0 0.0
    %109 = vmatpush1.msra.mxu0 0.0
    %110 = vmatprep.subr.mxu0 0.0
    %111 = vmatpush1.msra.mxu0 0.0
    %112 = vmatprep.subr.mxu0 0.0
    %113 = vmatpush1.msra.mxu0 0.0
    %114 = vmatprep.subr.mxu0 0.0
    %115 = vmatpush1.msra.mxu0 0.0
    %116 = vmatprep.subr.mxu0 0.0
    %117 = vmatpush1.msra.mxu0 0.0
    %118 = vmatprep.subr.mxu0 0.0
    %119 = vmatpush1.msra.mxu0 0.0
    %120 = vmatprep.subr.mxu0 0.0
    %121 = vmatpush1.msra.mxu0 0.0
    %122 = vmatprep.subr.mxu0 0.0
    %123 = vmatpush1.msra.mxu0 0.0
    %124 = vmatprep.subr.mxu0 0.0
    %125 = vmatpush1.msra.mxu0 0.0
    %126 = vmatprep.subr.mxu0 0.0
    %127 = vmatpush1.msra.mxu0 0.0
    %128 = vmatprep.subr.mxu0 0.0
    %129 = vmatpush1.msra.mxu0 0.0
    %130 = vmatprep.subr.mxu0 0.0
    %131 = vmatpush1.msra.mxu0 0.0
    %132 = vmatprep.mubr.f32.mxu0 0.0
    %133 = vmatmul.mubr.f32.gmra.mrb[0].mxu0 %v66
    %v134 = vpop.f32.mrb[0].mxu0
    %v135 = vadd.f32 0.0, %v134
    %v136 = vpop.f32.mrb[0].mxu0
    %137 = vdwg.mxu0
    %138 = vst [vmem:[%s1] sm:$0xff] %v135
    // Predicated region
    $region10: #{relative_attention_bias.1} parent=1 // pred_check
      _
    $region11: #{relative_attention_bias.1} parent=1 // pred_check_branch
      %140 = sbr.rel (0) target = $region13
    $region12: #{relative_attention_bias.1} parent=1 // pred_region
      _
    $region13: #{relative_attention_bias.1} parent=1 // pred_fallthru
      _
    // Predicated region
    $region14: #{relative_attention_bias.1} parent=1 // pred_check
      _
    $region15: #{relative_attention_bias.1} parent=1 // pred_check_branch
      %142 = sbr.rel (0) target = $region17
    $region16: #{relative_attention_bias.1} parent=1 // pred_region
      _
    $region17: #{relative_attention_bias.1} parent=1 // pred_fallthru
      _
    %143 = vsyncpa [#allocation3], 1

</llo_original>
